<compile_context>
chip_gen: v6e
topology: v6e:2x2x1
jax: 0.10.0
libtpu: 0.0.40
codegen_flags: <defaults>
</compile_context>

<pallas_src>
import functools

import jax
import jax.numpy as jnp
from jax.experimental import pallas as pl
from jax.experimental.pallas import tpu as pltpu


_OUT_LANES = 128                        # lane-dense (1, 128) partial row per split
_TILE_VMEM_BUDGET = 10 * 1024 * 1024    # per-step working set target (buffers + temps)
_VMEM_LIMIT = 32 * 1024 * 1024          # explicit scoped-VMEM request (safe on v5e/v6e/v7x)


def _round_up(x, m):
    return ((x + m - 1) // m) * m


def _num_tensorcores():
    """Best-effort TensorCores-per-chip: 2 on v7x, 1 on v5e/v6e.  Clamped to [1, 2]."""
    cores = 1
    try:
        info = pltpu.get_tpu_info()
        for attr in ("num_tensorcores", "tensorcores_per_chip", "num_cores_per_chip"):
            v = getattr(info, attr, None)
            if isinstance(v, int) and v > 0:
                cores = v
                break
    except Exception:
        pass
    if cores == 1:
        try:
            kind = jax.devices()[0].device_kind.lower()
            if "v7" in kind or "tpu7" in kind:
                cores = 2
        except Exception:
            pass
    return max(1, min(cores, 2))


def _choose_tiling(n, c, itemsize, num_splits):
    # Budget the FULL per-step working set, not just the raw block: the Pallas
    # double-buffered (tile_n, C) input block is lane-padded to 128 lanes in VMEM,
    # and the body creates a handful of dense (C, tile_n) f32 temporaries.
    lane_padded_row = _round_up(max(c, 1), 128) * itemsize   # VMEM bytes / block row
    dense_row = max(c, 1) * 4                                # bytes / row of an f32 temp
    per_row = 3 * lane_padded_row + 6 * dense_row            # 2x buffers + cast + ~6 temps
    cap = max(128, (_TILE_VMEM_BUDGET // per_row) // 128 * 128)
    per_split = int(pl.cdiv(n, num_splits))
    tile_n = int(min(cap, _round_up(per_split, 128)))        # lane-dense label row => x128
    tiles_per_split = int(pl.cdiv(per_split, tile_n))
    return tile_n, tiles_per_split


# --------------------------------------------------------------------------
# Fused kernel: per-split CE partial sums (+ optional feature-transform reg)
# --------------------------------------------------------------------------
def _focal_partials_kernel(logits_ref, labels_ref, *rest, num_classes, n_rows,
                           tile_n, tiles_per_split, has_trans, batch):
    if has_trans:
        trans_ref, out_ref, ce_acc, cnt_acc = rest
    else:
        out_ref, ce_acc, cnt_acc = rest

    s = pl.program_id(0)            # TensorCore split (core-parallel on v7x)
    j = pl.program_id(1)            # tile within the split (sequential reduction)

    @pl.when(j == 0)
    def _init():
        ce_acc[...] = jnp.zeros_like(ce_acc)
        cnt_acc[...] = jnp.zeros_like(cnt_acc)

    # ---- cross entropy for this tile ----------------------------------------
    # Logits arrive in native (tile_n, C) layout straight from HBM; one in-kernel
    # transpose (XLU is otherwise idle) makes all temporaries lane-dense (C, T).
    x = logits_ref[...].astype(jnp.float32).T                       # (C, T)
    lbl = labels_ref[...]                                           # (1, T) int32

    m = jnp.max(x, axis=0, keepdims=True)                           # (1, T)
    lse = jnp.log(jnp.sum(jnp.exp(x - m), axis=0, keepdims=True)) + m
    cls = jax.lax.broadcasted_iota(jnp.int32, (num_classes, 1), 0)  # (C, 1) column iota
    picked = jnp.sum(jnp.where(cls == lbl, x, 0.0), axis=0, keepdims=True)   # (1, T)

    # Validity mask: ignore_index (-100 / any negative), out-of-range labels, and
    # the unpadded tail (global column >= n_rows).  Uses the *unclamped* program
    # ids, so revisited / partial tail blocks never contribute.
    col = jax.lax.broadcasted_iota(jnp.int32, (1, tile_n), 1)
    gcol = (s * tiles_per_split + j) * tile_n + col
    valid = jnp.logical_and(jnp.logical_and(lbl >= 0, lbl < num_classes),
                            gcol < n_rows)

    # Lane-parallel accumulation: no cross-lane reduce / scalar RMW per tile.
    ce_acc[...] += jnp.where(valid, lse - picked, 0.0)
    cnt_acc[...] += valid.astype(jnp.float32)

    @pl.when(j == pl.num_programs(1) - 1)
    def _finalize():
        ce_sum = jnp.sum(ce_acc[...])
        cnt = jnp.sum(cnt_acc[...])
        if has_trans:
            # Batched feature-transform regularizer: contract on the shared last
            # axis directly ('bij,bkj->bik'); tiny vs. the CE stream.
            t = trans_ref[...].astype(jnp.float32)                    # (B, D, D)
            g = jnp.einsum("bij,bkj->bik", t, t,
                           preferred_element_type=jnp.float32)
            d = t.shape[1]
            row = jax.lax.broadcasted_iota(jnp.int32, (1, d, d), 1)
            cid = jax.lax.broadcasted_iota(jnp.int32, (1, d, d), 2)
            eye = jnp.where(row == cid, 1.0, 0.0).astype(jnp.float32)
            diff = g - eye
            sq = jnp.sum(diff * diff, axis=2)                         # (B, D)
            fro = jnp.sqrt(jnp.sum(sq, axis=1, keepdims=True))        # (B, 1)
            ftr = jnp.sum(fro) / jnp.float32(batch)
        else:
            ftr = jnp.float32(0.0)
        lane = jax.lax.broadcasted_iota(jnp.int32, (1, 1, _OUT_LANES), 2)
        vals = jnp.where(lane == 0, ce_sum,
               jnp.where(lane == 1, cnt,
               jnp.where(lane == 2, ftr, 0.0)))
        out_ref[...] = vals.astype(jnp.float32)


# --------------------------------------------------------------------------
# Wrapper: native-layout streaming, VMEM-budgeted tiling, tiny scalar combine
# --------------------------------------------------------------------------
def focal_loss(prediction, annotation, trans_feats=None,
               alpha=0.25, gamma=2, mat_diff_loss_scale=0.001):
    # NOTE: the reference forward adds the regularizer UNscaled; mat_diff_loss_scale
    # is intentionally unused, matching the PyTorch module.
    n, c = prediction.shape
    has_trans = trans_feats is not None

    num_splits = _num_tensorcores()
    if n < num_splits * 128:          # not enough rows to give every core a full tile
        num_splits = 1

    itemsize = jnp.dtype(prediction.dtype).itemsize
    tile_n, tiles_per_split = _choose_tiling(n, c, itemsize, num_splits)

    # Labels as a lane-dense (1, N) row -- free reshape, no pad, no transpose.
    labels = annotation.astype(jnp.int32).reshape(1, n)

    # Clamp the tile index so no block is ever fetched fully out of bounds; the
    # in-kernel global-column mask keeps clamped / partial tail data out of the sums.
    last_tile = int(pl.cdiv(n, tile_n)) - 1

    def _tile(s, j):
        return jnp.minimum(s * tiles_per_split + j, last_tile)

    in_specs = [
        pl.BlockSpec((tile_n, c), lambda s, j: (_tile(s, j), 0)),   # native (N, C) logits
        pl.BlockSpec((1, tile_n), lambda s, j: (0, _tile(s, j))),   # (1, N) labels
    ]
    args = [prediction, labels]
    batch = 0
    if has_trans:
        b, d, d2 = trans_feats.shape
        assert d == d2, "trans_feats must be (B, D, D)"
        batch = b
        # Constant index map -> fetched once per core; small enough that default
        # double-buffering is irrelevant.
        in_specs.append(pl.BlockSpec((b, d, d), lambda s, j: (0, 0, 0)))
        args.append(trans_feats)

    kernel = functools.partial(
        _focal_partials_kernel, num_classes=c, n_rows=n, tile_n=tile_n,
        tiles_per_split=tiles_per_split, has_trans=has_trans, batch=batch)

    out_shape = jax.ShapeDtypeStruct((num_splits, 1, _OUT_LANES), jnp.float32)
    scratch_shapes = [pltpu.VMEM((1, tile_n), jnp.float32),   # ce partial row
                      pltpu.VMEM((1, tile_n), jnp.float32)]   # valid-count partial row

    # CORE_PARALLEL engages the 2nd TensorCore on v7x; plain PARALLEL is the
    # fallback; single-core chips just run the size-1 split axis serially.
    if num_splits > 1:
        sem_options = [(getattr(pltpu, "CORE_PARALLEL", pltpu.PARALLEL), pltpu.ARBITRARY),
                       (pltpu.PARALLEL, pltpu.ARBITRARY)]
    else:
        sem_options = [(pltpu.ARBITRARY, pltpu.ARBITRARY)]

    partials = None
    last_err = None
    for sems in sem_options:
        try:
            partials = pl.pallas_call(
                kernel,
                out_shape=out_shape,
                grid=(num_splits, tiles_per_split),
                in_specs=in_specs,
                out_specs=pl.BlockSpec((1, 1, _OUT_LANES), lambda s, j: (s, 0, 0)),
                scratch_shapes=scratch_shapes,
                compiler_params=pltpu.CompilerParams(
                    dimension_semantics=sems,
                    vmem_limit_bytes=_VMEM_LIMIT),
            )(*args)
            break
        except Exception as e:      # CORE_PARALLEL unsupported -> retry with PARALLEL
            last_err = e
    if partials is None:
        raise last_err

    # Tiny scalar combine (cross-split reduction + focal weighting) in the wrapper.
    ce_sum = jnp.sum(partials[:, 0, 0])
    count = jnp.sum(partials[:, 0, 1])
    ce = ce_sum / count                     # mean CE over non-ignored targets
    pt = jnp.exp(-ce)
    fl = alpha * (1.0 - pt) ** gamma * ce
    if has_trans:
        fl = fl + partials[0, 0, 2]
    return fl


if __name__ == "__main__":
    key = jax.random.PRNGKey(0)
    k1, k2, k3 = jax.random.split(key, 3)

    N, C = 256, 16        # e.g. 2 point clouds x 128 points, 16 classes
    B, D = 2, 64          # feature-transform matrices

    prediction = jax.random.normal(k1, (N, C), dtype=jnp.float32)
    annotation = jax.random.randint(k2, (N,), 0, C, dtype=jnp.int32)
    trans_feats = jax.random.normal(k3, (B, D, D), dtype=jnp.float32) * 0.1

    out = focal_loss(prediction, annotation, trans_feats)
    jax.block_until_ready(out)

    # ---- pure-JAX references ----
    logp = jax.nn.log_softmax(prediction, axis=-1)
    ce_ref = -jnp.mean(logp[jnp.arange(N), annotation])
    pt_ref = jnp.exp(-ce_ref)
    fl_ref = 0.25 * (1.0 - pt_ref) ** 2 * ce_ref
    eye = jnp.eye(D)[None]
    mat_ref = jnp.mean(jnp.linalg.norm(
        jnp.einsum("bij,bkj->bik", trans_feats, trans_feats) - eye, axis=(1, 2)))
    ref_full = fl_ref + mat_ref
    assert jnp.allclose(out, ref_full, rtol=1e-4, atol=1e-5), (out, ref_full)

    # no-regularizer path
    out_ce = focal_loss(prediction, annotation)
    jax.block_until_ready(out_ce)
    assert jnp.allclose(out_ce, fl_ref, rtol=1e-4, atol=1e-5), (out_ce, fl_ref)

    # ignore_index (-100) and non-multiple-of-128 N (in-kernel tail masking, no pad)
    N2 = 200
    pred2 = prediction[:N2]
    ann2 = annotation[:N2].at[:7].set(-100)
    out_ig = focal_loss(pred2, ann2)
    jax.block_until_ready(out_ig)
    logp2 = jax.nn.log_softmax(pred2, axis=-1)
    m2 = ann2 >= 0
    ce2 = (-jnp.sum(jnp.where(m2, logp2[jnp.arange(N2), jnp.maximum(ann2, 0)], 0.0))
           / jnp.sum(m2))
    fl2 = 0.25 * (1.0 - jnp.exp(-ce2)) ** 2 * ce2
    assert jnp.allclose(out_ig, fl2, rtol=1e-4, atol=1e-5), (out_ig, fl2)

    # bf16 logits path: wrapper passes them uncast (half the HBM bytes), kernel upcasts
    pred_bf16 = prediction.astype(jnp.bfloat16)
    out_bf = focal_loss(pred_bf16, annotation)
    jax.block_until_ready(out_bf)
    logp_bf = jax.nn.log_softmax(pred_bf16.astype(jnp.float32), axis=-1)
    ce_bf = -jnp.mean(logp_bf[jnp.arange(N), annotation])
    fl_bf = 0.25 * (1.0 - jnp.exp(-ce_bf)) ** 2 * ce_bf
    assert jnp.allclose(out_bf, fl_bf, rtol=1e-3, atol=1e-4), (out_bf, fl_bf)

    print("KERNEL_OK")
</pallas_src>

<mosaic_0001>
module attributes {stable_mosaic.version = 11 : i64} {
  func.func @_focal_partials_kernel(%arg0: i32, %arg1: i32, %arg2: memref<256x16xf32, #tpu.memory_space<vmem>>, %arg3: memref<1x256xi32, #tpu.memory_space<vmem>>, %arg4: memref<2x64x64xf32, #tpu.memory_space<vmem>>, %arg5: memref<1x1x128xf32, #tpu.memory_space<vmem>>, %arg6: memref<1x256xf32, #tpu.memory_space<vmem>>, %arg7: memref<1x256xf32, #tpu.memory_space<vmem>>) attributes {dimension_semantics = [#tpu.dimension_semantics<arbitrary>, #tpu.dimension_semantics<arbitrary>], iteration_bounds = array<i64: 1, 1>, scalar_prefetch = 0 : i64, scratch_operands = 2 : i64, tpu.core_type = #tpu.core_type<tc>, window_params = [{transform_indices = @transform_0, window_bounds = array<i64: 256, 16>}, {transform_indices = @transform_1, window_bounds = array<i64: 1, 256>}, {pipeline_mode = #tpu.pipeline_mode<synchronous>, transform_indices = @transform_2, window_bounds = array<i64: 2, 64, 64>}, {transform_indices = @transform_3, window_bounds = array<i64: 1, 1, 128>}]} {
    %c0_i32 = arith.constant 0 : i32
    %0 = arith.cmpi eq, %arg1, %c0_i32 : i32
    %1 = arith.extui %0 : i1 to i32
    %c0_i32_0 = arith.constant 0 : i32
    %2 = arith.cmpi ne, %1, %c0_i32_0 : i32
    scf.if %2 {
      %cst_20 = arith.constant 0.000000e+00 : f32
      %51 = vector.broadcast %cst_20 : f32 to vector<1x256xf32>
      %c0_21 = arith.constant 0 : index
      %c0_22 = arith.constant 0 : index
      %52 = vector.load %arg6[%c0_21, %c0_22] : memref<1x256xf32, #tpu.memory_space<vmem>>, vector<1x256xf32>
      tpu.vector_store %arg6[%c0_21, %c0_22], %51 {strides = array<i32>} : memref<1x256xf32, #tpu.memory_space<vmem>>, vector<1x256xf32>,
      %cst_23 = arith.constant 0.000000e+00 : f32
      %53 = vector.broadcast %cst_23 : f32 to vector<1x256xf32>
      %c0_24 = arith.constant 0 : index
      %c0_25 = arith.constant 0 : index
      %54 = vector.load %arg7[%c0_24, %c0_25] : memref<1x256xf32, #tpu.memory_space<vmem>>, vector<1x256xf32>
      tpu.vector_store %arg7[%c0_24, %c0_25], %53 {strides = array<i32>} : memref<1x256xf32, #tpu.memory_space<vmem>>, vector<1x256xf32>,
    } else {
    }
    %c0 = arith.constant 0 : index
    %c0_1 = arith.constant 0 : index
    %3 = vector.load %arg2[%c0, %c0_1] : memref<256x16xf32, #tpu.memory_space<vmem>>, vector<256x16xf32>
    %4 = tpu.transpose %3, [1, 0] : vector<256x16xf32> -> vector<16x256xf32>
    %c0_2 = arith.constant 0 : index
    %c0_3 = arith.constant 0 : index
    %5 = vector.load %arg3[%c0_2, %c0_3] : memref<1x256xi32, #tpu.memory_space<vmem>>, vector<1x256xi32>
    %cst = arith.constant dense<0xFF800000> : vector<256xf32>
    %6 = vector.multi_reduction <maximumf>, %4, %cst [0] : vector<16x256xf32> to vector<256xf32>
    %7 = vector.shape_cast %6 : vector<256xf32> to vector<1x256xf32>
    %8 = vector.broadcast %7 : vector<1x256xf32> to vector<16x256xf32>
    %9 = arith.subf %4, %8 : vector<16x256xf32>
    %10 = math.exp %9 : vector<16x256xf32>
    %cst_4 = arith.constant dense<0.000000e+00> : vector<256xf32>
    %11 = vector.multi_reduction <add>, %10, %cst_4 [0] : vector<16x256xf32> to vector<256xf32>
    %12 = vector.shape_cast %11 : vector<256xf32> to vector<1x256xf32>
    %13 = math.log %12 : vector<1x256xf32>
    %14 = arith.addf %13, %7 : vector<1x256xf32>
    %15 = tpu.iota {dimensions = array<i32: 0>} : vector<16x1xi32>
    %16 = vector.broadcast %15 : vector<16x1xi32> to vector<16x256xi32>
    %17 = vector.broadcast %5 : vector<1x256xi32> to vector<16x256xi32>
    %18 = arith.cmpi eq, %16, %17 : vector<16x256xi32>
    %cst_5 = arith.constant 0.000000e+00 : f32
    %19 = vector.broadcast %cst_5 : f32 to vector<16x256xf32>
    %20 = arith.select %18, %4, %19 : vector<16x256xi1>, vector<16x256xf32>
    %cst_6 = arith.constant dense<0.000000e+00> : vector<256xf32>
    %21 = vector.multi_reduction <add>, %20, %cst_6 [0] : vector<16x256xf32> to vector<256xf32>
    %22 = vector.shape_cast %21 : vector<256xf32> to vector<1x256xf32>
    %23 = tpu.iota {dimensions = array<i32: 1>} : vector<1x256xi32>
    %c1_i32 = arith.constant 1 : i32
    %24 = arith.muli %arg0, %c1_i32 : i32
    %25 = arith.addi %24, %arg1 : i32
    %c256_i32 = arith.constant 256 : i32
    %26 = arith.muli %25, %c256_i32 : i32
    %27 = vector.broadcast %26 : i32 to vector<1x256xi32>
    %28 = arith.addi %27, %23 : vector<1x256xi32>
    %c0_i32_7 = arith.constant 0 : i32
    %29 = vector.broadcast %c0_i32_7 : i32 to vector<1x256xi32>
    %30 = arith.cmpi sge, %5, %29 : vector<1x256xi32>
    %c16_i32 = arith.constant 16 : i32
    %31 = vector.broadcast %c16_i32 : i32 to vector<1x256xi32>
    %32 = arith.cmpi slt, %5, %31 : vector<1x256xi32>
    %33 = arith.andi %30, %32 : vector<1x256xi1>
    %c256_i32_8 = arith.constant 256 : i32
    %34 = vector.broadcast %c256_i32_8 : i32 to vector<1x256xi32>
    %35 = arith.cmpi slt, %28, %34 : vector<1x256xi32>
    %36 = arith.andi %33, %35 : vector<1x256xi1>
    %c0_9 = arith.constant 0 : index
    %c0_10 = arith.constant 0 : index
    %37 = vector.load %arg6[%c0_9, %c0_10] : memref<1x256xf32, #tpu.memory_space<vmem>>, vector<1x256xf32>
    %38 = arith.subf %14, %22 : vector<1x256xf32>
    %cst_11 = arith.constant 0.000000e+00 : f32
    %39 = vector.broadcast %cst_11 : f32 to vector<1x256xf32>
    %40 = arith.select %36, %38, %39 : vector<1x256xi1>, vector<1x256xf32>
    %41 = arith.addf %37, %40 : vector<1x256xf32>
    %c0_12 = arith.constant 0 : index
    %c0_13 = arith.constant 0 : index
    %42 = vector.load %arg6[%c0_12, %c0_13] : memref<1x256xf32, #tpu.memory_space<vmem>>, vector<1x256xf32>
    tpu.vector_store %arg6[%c0_12, %c0_13], %41 {strides = array<i32>} : memref<1x256xf32, #tpu.memory_space<vmem>>, vector<1x256xf32>,
    %c0_14 = arith.constant 0 : index
    %c0_15 = arith.constant 0 : index
    %43 = vector.load %arg7[%c0_14, %c0_15] : memref<1x256xf32, #tpu.memory_space<vmem>>, vector<1x256xf32>
    %44 = arith.extui %36 : vector<1x256xi1> to vector<1x256xi32>
    %45 = arith.sitofp %44 : vector<1x256xi32> to vector<1x256xf32>
    %46 = arith.addf %43, %45 : vector<1x256xf32>
    %c0_16 = arith.constant 0 : index
    %c0_17 = arith.constant 0 : index
    %47 = vector.load %arg7[%c0_16, %c0_17] : memref<1x256xf32, #tpu.memory_space<vmem>>, vector<1x256xf32>
    tpu.vector_store %arg7[%c0_16, %c0_17], %46 {strides = array<i32>} : memref<1x256xf32, #tpu.memory_space<vmem>>, vector<1x256xf32>,
    %c0_i32_18 = arith.constant 0 : i32
    %48 = arith.cmpi eq, %arg1, %c0_i32_18 : i32
    %49 = arith.extui %48 : i1 to i32
    %c0_i32_19 = arith.constant 0 : i32
    %50 = arith.cmpi ne, %49, %c0_i32_19 : i32
    scf.if %50 {
      %c0_20 = arith.constant 0 : index
      %c0_21 = arith.constant 0 : index
      %51 = vector.load %arg6[%c0_20, %c0_21] : memref<1x256xf32, #tpu.memory_space<vmem>>, vector<1x256xf32>
      %52 = vector.shape_cast %51 : vector<1x256xf32> to vector<1x1x256xf32>
      %cst_22 = arith.constant dense<0.000000e+00> : vector<1xf32>
      %53 = vector.multi_reduction <add>, %52, %cst_22 [1, 2] : vector<1x1x256xf32> to vector<1xf32>
      %54 = vector.shape_cast %53 : vector<1xf32> to vector<1x1x1xf32>
      %55 = vector.extract %54[0, 0, 0] : f32 from vector<1x1x1xf32>
      %c0_23 = arith.constant 0 : index
      %c0_24 = arith.constant 0 : index
      %56 = vector.load %arg7[%c0_23, %c0_24] : memref<1x256xf32, #tpu.memory_space<vmem>>, vector<1x256xf32>
      %57 = vector.shape_cast %56 : vector<1x256xf32> to vector<1x1x256xf32>
      %cst_25 = arith.constant dense<0.000000e+00> : vector<1xf32>
      %58 = vector.multi_reduction <add>, %57, %cst_25 [1, 2] : vector<1x1x256xf32> to vector<1xf32>
      %59 = vector.shape_cast %58 : vector<1xf32> to vector<1x1x1xf32>
      %60 = vector.extract %59[0, 0, 0] : f32 from vector<1x1x1xf32>
      %c0_26 = arith.constant 0 : index
      %c0_27 = arith.constant 0 : index
      %c0_28 = arith.constant 0 : index
      %61 = vector.load %arg4[%c0_26, %c0_27, %c0_28] : memref<2x64x64xf32, #tpu.memory_space<vmem>>, vector<2x64x64xf32>
      "tpu.trace_start"() <{level = 10 : i32, message = "bij,bkj->bik"}> : () -> ()
      %cst_29 = arith.constant dense<0.000000e+00> : vector<2x64x64xf32>
      %62 = tpu.matmul %61, %61, %cst_29 {dimension_numbers = #tpu.dot_dimension_numbers<[2], [2], [1], [1], [0, 0, 0, 1, 1, 1], [0], [0]>} : vector<2x64x64xf32>, vector<2x64x64xf32>, vector<2x64x64xf32> -> vector<2x64x64xf32>
      "tpu.trace_stop"() : () -> ()
      %63 = tpu.iota {dimensions = array<i32: 1>} : vector<1x64x64xi32>
      %64 = tpu.iota {dimensions = array<i32: 2>} : vector<1x64x64xi32>
      %65 = arith.cmpi eq, %63, %64 : vector<1x64x64xi32>
      %cst_30 = arith.constant 1.000000e+00 : f32
      %cst_31 = arith.constant 0.000000e+00 : f32
      %66 = vector.broadcast %cst_30 : f32 to vector<1x64x64xf32>
      %67 = vector.broadcast %cst_31 : f32 to vector<1x64x64xf32>
      %68 = arith.select %65, %66, %67 : vector<1x64x64xi1>, vector<1x64x64xf32>
      %69 = vector.broadcast %68 : vector<1x64x64xf32> to vector<2x64x64xf32>
      %70 = arith.subf %62, %69 : vector<2x64x64xf32>
      %71 = arith.mulf %70, %70 : vector<2x64x64xf32>
      %cst_32 = arith.constant dense<0.000000e+00> : vector<2x64xf32>
      %72 = vector.multi_reduction <add>, %71, %cst_32 [2] : vector<2x64x64xf32> to vector<2x64xf32>
      %cst_33 = arith.constant dense<0.000000e+00> : vector<2xf32>
      %73 = vector.multi_reduction <add>, %72, %cst_33 [1] : vector<2x64xf32> to vector<2xf32>
      %74 = vector.shape_cast %73 : vector<2xf32> to vector<2x1xf32>
      %75 = math.sqrt %74 : vector<2x1xf32>
      %76 = vector.shape_cast %75 : vector<2x1xf32> to vector<1x2x1xf32>
      %cst_34 = arith.constant dense<0.000000e+00> : vector<1xf32>
      %77 = vector.multi_reduction <add>, %76, %cst_34 [1, 2] : vector<1x2x1xf32> to vector<1xf32>
      %78 = vector.shape_cast %77 : vector<1xf32> to vector<1x1x1xf32>
      %79 = vector.extract %78[0, 0, 0] : f32 from vector<1x1x1xf32>
      %cst_35 = arith.constant 2.000000e+00 : f32
      %80 = arith.divf %79, %cst_35 : f32
      %81 = tpu.iota {dimensions = array<i32: 2>} : vector<1x1x128xi32>
      %c0_i32_36 = arith.constant 0 : i32
      %82 = vector.broadcast %c0_i32_36 : i32 to vector<1x1x128xi32>
      %83 = arith.cmpi eq, %81, %82 : vector<1x1x128xi32>
      %c1_i32_37 = arith.constant 1 : i32
      %84 = vector.broadcast %c1_i32_37 : i32 to vector<1x1x128xi32>
      %85 = arith.cmpi eq, %81, %84 : vector<1x1x128xi32>
      %c2_i32 = arith.constant 2 : i32
      %86 = vector.broadcast %c2_i32 : i32 to vector<1x1x128xi32>
      %87 = arith.cmpi eq, %81, %86 : vector<1x1x128xi32>
      %cst_38 = arith.constant 0.000000e+00 : f32
      %88 = vector.broadcast %80 : f32 to vector<1x1x128xf32>
      %89 = vector.broadcast %cst_38 : f32 to vector<1x1x128xf32>
      %90 = arith.select %87, %88, %89 : vector<1x1x128xi1>, vector<1x1x128xf32>
      %91 = vector.broadcast %60 : f32 to vector<1x1x128xf32>
      %92 = arith.select %85, %91, %90 : vector<1x1x128xi1>, vector<1x1x128xf32>
      %93 = vector.broadcast %55 : f32 to vector<1x1x128xf32>
      %94 = arith.select %83, %93, %92 : vector<1x1x128xi1>, vector<1x1x128xf32>
      %c0_39 = arith.constant 0 : index
      %c0_40 = arith.constant 0 : index
      %c0_41 = arith.constant 0 : index
      %95 = vector.load %arg5[%c0_39, %c0_40, %c0_41] : memref<1x1x128xf32, #tpu.memory_space<vmem>>, vector<1x1x128xf32>
      tpu.vector_store %arg5[%c0_39, %c0_40, %c0_41], %94 {strides = array<i32>} : memref<1x1x128xf32, #tpu.memory_space<vmem>>, vector<1x1x128xf32>,
    } else {
    }
    return
  }
  func.func @transform_0(%arg0: i32, %arg1: i32) -> (i32, i32) {
    %c1_i32 = arith.constant 1 : i32
    %0 = arith.muli %arg0, %c1_i32 : i32
    %1 = arith.addi %0, %arg1 : i32
    %c0_i32 = arith.constant 0 : i32
    %2 = arith.minsi %1, %c0_i32 : i32
    %c0_i32_0 = arith.constant 0 : i32
    %c0_i32_1 = arith.constant 0 : i32
    return %2, %c0_i32_0 : i32, i32
  }
  func.func @transform_1(%arg0: i32, %arg1: i32) -> (i32, i32) {
    %c1_i32 = arith.constant 1 : i32
    %0 = arith.muli %arg0, %c1_i32 : i32
    %1 = arith.addi %0, %arg1 : i32
    %c0_i32 = arith.constant 0 : i32
    %2 = arith.minsi %1, %c0_i32 : i32
    %c0_i32_0 = arith.constant 0 : i32
    %c0_i32_1 = arith.constant 0 : i32
    return %c0_i32_0, %2 : i32, i32
  }
  func.func @transform_2(%arg0: i32, %arg1: i32) -> (i32, i32, i32) {
    %c0_i32 = arith.constant 0 : i32
    %c0_i32_0 = arith.constant 0 : i32
    %c0_i32_1 = arith.constant 0 : i32
    %c0_i32_2 = arith.constant 0 : i32
    return %c0_i32, %c0_i32_0, %c0_i32_1 : i32, i32, i32
  }
  func.func @transform_3(%arg0: i32, %arg1: i32) -> (i32, i32, i32) {
    %c0_i32 = arith.constant 0 : i32
    %c0_i32_0 = arith.constant 0 : i32
    %c0_i32_1 = arith.constant 0 : i32
    return %arg0, %c0_i32, %c0_i32_0 : i32, i32, i32
  }
}

</mosaic_0001>

<llo_original>
// kernel: tpu_custom_call.1
$region0: #{tpu_custom_call.1}
  #allocation0 [shape = 'u32[]', space=smem, size = 0x4, offset = 0x4, fixed_abs, tag = 'smem constant byte address 0x4 - core index']
  #allocation1 [shape = 'u32[144,128]{1,0:T(1,128)}', space=vmem, size = 0x12000, scoped, tag = 'internal scratch']
  #allocation2 [shape = 'f32[1,256]{1,0:T(1,128)}', space=vmem, size = 0x400, scoped, tag = 'scratch operand']
  #allocation3 [shape = 'f32[1,256]{1,0:T(1,128)}', space=vmem, size = 0x400, scoped, tag = 'scratch operand']
  %s0 = inlined_call_operand.vmem [shape: f32[256,16], index: 0, kind: input, shape index: {}]
  %s1 = inlined_call_operand.vmem [shape: s32[1,256], index: 1, kind: input, shape index: {}]
  %s2 = inlined_call_operand.vmem [shape: f32[2,64,64], index: 2, kind: input, shape index: {}]
  %s3 = inlined_call_operand.hbm [shape: f32[1,1,128], index: 3, kind: output, shape index: {}]
  %s4 = sld [smem:[#allocation0]]
  $region30: #{tpu_custom_call.1} parent=0
    _
  %s6 = ssub.s32 1, %s4
  %s7 = scalar_select 0, %s6, %s4
  $region1: #{tpu_custom_call.1} parent=0
    #allocation4 [shape = 'u8[512]{0}', space=vmem, size = 0x400, scoped, tag = 'output window, operand 0, single buffered']
    #allocation5 [shape = 's32[1]{0}', space=sflag, size = 0x4, scoped, tag = 'scoped memory for tpu_custom_call.1']
    %8 = vsyncpa [#allocation5], 0
    // Predicated region
    $region2: #{tpu_custom_call.1} parent=1 // pred_check
      _
    $region3: #{tpu_custom_call.1} parent=1 // pred_check_branch
      %10 = sbr.rel (0) target = $region5
    $region4: #{tpu_custom_call.1} parent=1 // pred_region
      %s11 = sadd.s32 0, 0
      %p12 = scmp.lt.s32.totalorder %s11, 0
      %s13 = scalar_select %p12, %s11, 0
      %s14 = smul.u32 32, %s13
      %p15 = scmp.lt.s32.totalorder %s14, 31
      %s16 = scalar_select %p15, %s14, 31
      %s17 = smul.addr %s16, 8
      %s18 = scalar_lea.vmem %s0, %s17
      %s19 = sadd.s32 0, 0
      %p20 = scmp.lt.s32.totalorder %s19, 0
      %s21 = scalar_select %p20, %s19, 0
      %s22 = smul.u32 32, %s21
    $region5: #{tpu_custom_call.1} parent=1 // pred_fallthru
      _
    // Predicated region
    $region6: #{tpu_custom_call.1} parent=1 // pred_check
      _
    $region7: #{tpu_custom_call.1} parent=1 // pred_check_branch
      %24 = sbr.rel (0) target = $region9
    $region8: #{tpu_custom_call.1} parent=1 // pred_region
      %s25 = sadd.s32 0, 0
      %p26 = scmp.lt.s32.totalorder %s25, 0
      %s27 = scalar_select %p26, %s25, 0
      %s28 = smul.u32 2, %s27
      %p29 = scmp.lt.s32.totalorder %s28, 1
      %s30 = scalar_select %p29, %s28, 1
      %s31 = scalar_lea.vmem %s1, %s30
      %s32 = sadd.s32 0, 0
      %p33 = scmp.lt.s32.totalorder %s32, 0
      %s34 = scalar_select %p33, %s32, 0
      %s35 = smul.u32 2, %s34
    $region9: #{tpu_custom_call.1} parent=1 // pred_fallthru
      _
    // Predicated region
    $region10: #{tpu_custom_call.1} parent=1 // pred_check
      _
    $region11: #{tpu_custom_call.1} parent=1 // pred_check_branch
      %37 = sbr.rel (0) target = $region13
    $region12: #{tpu_custom_call.1} parent=1 // pred_region
      _
    $region13: #{tpu_custom_call.1} parent=1 // pred_fallthru
      _
    %s38 = sadd.s32 0, 0
    %p39 = scmp.lt.s32.totalorder %s38, 0
    %s40 = scalar_select %p39, %s38, 0
    %s41 = smul.u32 32, %s40
    %p42 = scmp.lt.s32.totalorder %s41, 31
    %s43 = scalar_select %p42, %s41, 31
    %s44 = smul.addr %s43, 8
    %s45 = scalar_lea.vmem %s0, %s44
    %s46 = sadd.s32 0, 0
    %p47 = scmp.lt.s32.totalorder %s46, 0
    %s48 = scalar_select %p47, %s46, 0
    %s49 = smul.u32 2, %s48
    %p50 = scmp.lt.s32.totalorder %s49, 1
    %s51 = scalar_select %p50, %s49, 1
    %s52 = scalar_lea.vmem %s1, %s51
    %s53 = sadd.s32 0, 0
    %p54 = scmp.lt.s32.totalorder %s53, 0
    %s55 = scalar_select %p54, %s53, 0
    %s56 = smul.u32 32, %s55
    %p57 = scmp.lt.s32.totalorder %s56, 31
    %s58 = scalar_select %p57, %s56, 31
    %s59 = smul.addr %s58, 8
    %s60 = scalar_lea.vmem %s0, %s59
    %s61 = sadd.s32 0, 0
    %p62 = scmp.lt.s32.totalorder %s61, 0
    %s63 = scalar_select %p62, %s61, 0
    %s64 = smul.u32 32, %s63
    %s65 = sadd.s32 0, 0
    %p66 = scmp.lt.s32.totalorder %s65, 0
    %s67 = scalar_select %p66, %s65, 0
    %s68 = smul.u32 2, %s67
    %p69 = scmp.lt.s32.totalorder %s68, 1
    %s70 = scalar_select %p69, %s68, 1
    %s71 = scalar_lea.vmem %s1, %s70
    %s72 = sadd.s32 0, 0
    %p73 = scmp.lt.s32.totalorder %s72, 0
    %s74 = scalar_select %p73, %s72, 0
    %s75 = smul.u32 2, %s74
    %p76 = scmp.eq.s32.totalorder 0, 0
    // Predicated region
    $region14: #{tpu_custom_call.1} parent=1 // pred_check
      %p77 = pneg %p76
    $region15: #{tpu_custom_call.1} parent=1 // pred_check_branch
      %79 = sbr.rel (%p77) target = $region17
    $region16: #{tpu_custom_call.1} parent=1 // pred_region
      %v80 = vlaneseq
      %vm81 = vcmp.ge.s32.totalorder %v80, 0
      %vm82 = vcmp.lt.s32.totalorder %v80, 256
      %vm83 = vmand %vm81, %vm82
      %84 = vst.msk [vmem:[#allocation2] sm:$0x3] %vm83, 0.0
      %85 = vst.msk [vmem:[#allocation3] sm:$0x3] %vm83, 0.0
    $region17: #{tpu_custom_call.1} parent=1 // pred_fallthru
      _
    %v86 = vld [vmem:[%s60] sm:$0xff]
    %v87 = vld [vmem:[%s60 + $0x8] sm:$0xff]
    %v88 = vld [vmem:[%s60 + $0x10] sm:$0xff]
    %v89 = vld [vmem:[%s60 + $0x18] sm:$0xff]
    %v90 = vld [vmem:[%s60 + $0x20] sm:$0xff]
    %v91 = vld [vmem:[%s60 + $0x28] sm:$0xff]
    %v92 = vld [vmem:[%s60 + $0x30] sm:$0xff]
    %v93 = vld [vmem:[%s60 + $0x38] sm:$0xff]
    %v94 = vld [vmem:[%s60 + $0x40] sm:$0xff]
    %v95 = vld [vmem:[%s60 + $0x48] sm:$0xff]
    %v96 = vld [vmem:[%s60 + $0x50] sm:$0xff]
    %v97 = vld [vmem:[%s60 + $0x58] sm:$0xff]
    %v98 = vld [vmem:[%s60 + $0x60] sm:$0xff]
    %v99 = vld [vmem:[%s60 + $0x68] sm:$0xff]
    %v100 = vld [vmem:[%s60 + $0x70] sm:$0xff]
    %v101 = vld [vmem:[%s60 + $0x78] sm:$0xff]
    %v102 = vld [vmem:[%s60 + $0x80] sm:$0xff]
    %v103 = vld [vmem:[%s60 + $0x88] sm:$0xff]
    %v104 = vld [vmem:[%s60 + $0x90] sm:$0xff]
    %v105 = vld [vmem:[%s60 + $0x98] sm:$0xff]
    %v106 = vld [vmem:[%s60 + $0xa0] sm:$0xff]
    %v107 = vld [vmem:[%s60 + $0xa8] sm:$0xff]
    %v108 = vld [vmem:[%s60 + $0xb0] sm:$0xff]
    %v109 = vld [vmem:[%s60 + $0xb8] sm:$0xff]
    %v110 = vld [vmem:[%s60 + $0xc0] sm:$0xff]
    %v111 = vld [vmem:[%s60 + $0xc8] sm:$0xff]
    %v112 = vld [vmem:[%s60 + $0xd0] sm:$0xff]
    %v113 = vld [vmem:[%s60 + $0xd8] sm:$0xff]
    %v114 = vld [vmem:[%s60 + $0xe0] sm:$0xff]
    %v115 = vld [vmem:[%s60 + $0xe8] sm:$0xff]
    %v116 = vld [vmem:[%s60 + $0xf0] sm:$0xff]
    %v117 = vld [vmem:[%s60 + $0xf8] sm:$0xff]
    %118 = vxpose.xlu0.b32.start [1/16] %v86, 128
    %119 = vxpose.xlu0.b32.cont [2/16] %v87, 128
    %120 = vxpose.xlu0.b32.cont [3/16] %v88, 128
    %121 = vxpose.xlu0.b32.cont [4/16] %v89, 128
    %122 = vxpose.xlu0.b32.cont [5/16] %v90, 128
    %123 = vxpose.xlu0.b32.cont [6/16] %v91, 128
    %124 = vxpose.xlu0.b32.cont [7/16] %v92, 128
    %125 = vxpose.xlu0.b32.cont [8/16] %v93, 128
    %126 = vxpose.xlu0.b32.cont [9/16] %v94, 128
    %127 = vxpose.xlu0.b32.cont [10/16] %v95, 128
    %128 = vxpose.xlu0.b32.cont [11/16] %v96, 128
    %129 = vxpose.xlu0.b32.cont [12/16] %v97, 128
    %130 = vxpose.xlu0.b32.cont [13/16] %v98, 128
    %131 = vxpose.xlu0.b32.cont [14/16] %v99, 128
    %132 = vxpose.xlu0.b32.cont [15/16] %v100, 128
    %133 = vxpose.xlu0.b32.end [16/16] %v101, 128
    %v134 = vpop.trf.xlu0
    %v135 = vpop.trf.xlu0
    %v136 = vpop.trf.xlu0
    %v137 = vpop.trf.xlu0
    %v138 = vpop.trf.xlu0
    %v139 = vpop.trf.xlu0
    %v140 = vpop.trf.xlu0
    %v141 = vpop.trf.xlu0
    %v142 = vpop.trf.xlu0
    %v143 = vpop.trf.xlu0
    %v144 = vpop.trf.xlu0
    %v145 = vpop.trf.xlu0
    %v146 = vpop.trf.xlu0
    %v147 = vpop.trf.xlu0
    %v148 = vpop.trf.xlu0
    %v149 = vpop.trf.xlu0
    %150 = vxpose.xlu0.b32.start [1/16] %v102, 128
    %151 = vxpose.xlu0.b32.cont [2/16] %v103, 128
    %152 = vxpose.xlu0.b32.cont [3/16] %v104, 128
    %153 = vxpose.xlu0.b32.cont [4/16] %v105, 128
    %154 = vxpose.xlu0.b32.cont [5/16] %v106, 128
    %155 = vxpose.xlu0.b32.cont [6/16] %v107, 128
    %156 = vxpose.xlu0.b32.cont [7/16] %v108, 128
    %157 = vxpose.xlu0.b32.cont [8/16] %v109, 128
    %158 = vxpose.xlu0.b32.cont [9/16] %v110, 128
    %159 = vxpose.xlu0.b32.cont [10/16] %v111, 128
    %160 = vxpose.xlu0.b32.cont [11/16] %v112, 128
    %161 = vxpose.xlu0.b32.cont [12/16] %v113, 128
    %162 = vxpose.xlu0.b32.cont [13/16] %v114, 128
    %163 = vxpose.xlu0.b32.cont [14/16] %v115, 128
    %164 = vxpose.xlu0.b32.cont [15/16] %v116, 128
    %165 = vxpose.xlu0.b32.end [16/16] %v117, 128
    %v166 = vpop.trf.xlu0
    %v167 = vpop.trf.xlu0
    %v168 = vpop.trf.xlu0
    %v169 = vpop.trf.xlu0
    %v170 = vpop.trf.xlu0
    %v171 = vpop.trf.xlu0
    %v172 = vpop.trf.xlu0
    %v173 = vpop.trf.xlu0
    %v174 = vpop.trf.xlu0
    %v175 = vpop.trf.xlu0
    %v176 = vpop.trf.xlu0
    %v177 = vpop.trf.xlu0
    %v178 = vpop.trf.xlu0
    %v179 = vpop.trf.xlu0
    %v180 = vpop.trf.xlu0
    %v181 = vpop.trf.xlu0
    %v182 = vld [vmem:[%s71] sm:$0x3]
    %v183 = vmax.f32 %v134, %v135
    %v184 = vrot.slane %v183, 4
    %v185 = vmax.f32 %v183, %v184
    %v186 = vrot.slane %v185, 2
    %v187 = vmax.f32 %v185, %v186
    %v188 = vrot.slane %v187, 1
    %v189 = vmax.f32 %v187, %v188
    %v190 = vmax.f32 %v166, %v167
    %v191 = vrot.slane %v190, 4
    %v192 = vmax.f32 %v190, %v191
    %v193 = vrot.slane %v192, 2
    %v194 = vmax.f32 %v192, %v193
    %v195 = vrot.slane %v194, 1
    %v196 = vmax.f32 %v194, %v195
    %v197 = vsub.f32 %v134, %v189
    %v198 = vsub.f32 %v166, %v196
    %v199 = vsub.f32 %v135, %v189
    %v200 = vsub.f32 %v167, %v196
    %v201 = vmul.f32 %v197, 1.442695
    %v202 = vpow.pop %v201
    %v203 = vmul.f32 %v198, 1.442695
    %v204 = vpow.pop %v203
    %v205 = vmul.f32 %v199, 1.442695
    %v206 = vpow.pop %v205
    %v207 = vmul.f32 %v200, 1.442695
    %v208 = vpow.pop %v207
    %v209 = vadd.f32 %v202, %v206
    %v210 = vrot.slane %v209, 4
    %v211 = vadd.f32 %v209, %v210
    %v212 = vrot.slane %v211, 2
    %v213 = vadd.f32 %v211, %v212
    %v214 = vrot.slane %v213, 1
    %v215 = vadd.f32 %v213, %v214
    %v216 = vadd.f32 %v204, %v208
    %v217 = vrot.slane %v216, 4
    %v218 = vadd.f32 %v216, %v217
    %v219 = vrot.slane %v218, 2
    %v220 = vadd.f32 %v218, %v219
    %v221 = vrot.slane %v220, 1
    %v222 = vadd.f32 %v220, %v221
    %v223 = vlog2.pop %v215
    %v224 = vmul.f32 %v223, 0.6931472
    %v225 = vlog2.pop %v222
    %v226 = vmul.f32 %v225, 0.6931472
    %v227 = vadd.f32 %v224, %v189
    %v228 = vadd.f32 %v226, %v196
    %v229 = vlaneseq
    %v230 = vshrl.u32 %v229, 7
    %v231 = vadd.s32 %v230, 8
    %v232 = vlaneseq
    %v233 = vshrl.u32 %v232, 7
    %v234 = vsub.s32 0, %v233
    %v235 = vrot.slane %v182, %v234
    %v236 = vlaneseq
    %v237 = vshrl.u32 %v236, 7
    %v238 = vsub.s32 1, %v237
    %v239 = vrot.slane %v182, %v238
    %vm240 = vcmp.eq.s32.totalorder %v230, %v235
    %vm241 = vcmp.eq.s32.totalorder %v230, %v239
    %vm242 = vcmp.eq.s32.totalorder %v231, %v235
    %vm243 = vcmp.eq.s32.totalorder %v231, %v239
    %v244 = vsel %vm240, %v134, 0.0
    %v245 = vsel %vm241, %v166, 0.0
    %v246 = vsel %vm242, %v135, 0.0
    %v247 = vsel %vm243, %v167, 0.0
    %v248 = vadd.f32 %v244, %v246
    %v249 = vrot.slane %v248, 4
    %v250 = vadd.f32 %v248, %v249
    %v251 = vrot.slane %v250, 2
    %v252 = vadd.f32 %v250, %v251
    %v253 = vrot.slane %v252, 1
    %v254 = vadd.f32 %v252, %v253
    %v255 = vadd.f32 %v245, %v247
    %v256 = vrot.slane %v255, 4
    %v257 = vadd.f32 %v255, %v256
    %v258 = vrot.slane %v257, 2
    %v259 = vadd.f32 %v257, %v258
    %v260 = vrot.slane %v259, 1
    %v261 = vadd.f32 %v259, %v260
    %v262 = vlaneseq
    %v263 = vand.u32 %v262, 127
    %v264 = vadd.s32 %v263, 128
    %s265 = sadd.s32 0, 0
    %s266 = smul.u32 %s265, 256
    %v267 = vstv %s266
    %v268 = vadd.s32 %v267, %v263
    %v269 = vadd.s32 %v267, %v264
    %vm270 = vcmp.ge.s32.totalorder %v182, 0
    %vm271 = vcmp.lt.s32.totalorder %v182, 16
    %vm272 = vmand %vm270, %vm271
    %vm273 = vcmp.lt.s32.totalorder %v268, 256
    %vm274 = vcmp.lt.s32.totalorder %v269, 256
    %v275 = vsel %vm273, 1, 0
    %v276 = vsel %vm274, 1, 0
    %v277 = vcombine.low %v275, %v276
    %v279 = vunpack.c.l.s4 1966171168
    %v280 = vunpack.c.0.s8 %v279
    %v281 = vlaneseq
    %v282 = vshrl.u32 %v281, 7
    %v283 = vsub.s32 %v280, %v282
    %v284 = vrot.slane %v277, %v283
    %v286 = vunpack.c.l.s4 1966171168
    %v287 = vunpack.c.0.s8 %v286
    %v288 = vlaneseq
    %v289 = vshrl.u32 %v288, 7
    %v290 = vsub.s32 %v287, %v289
    %v291 = vrot.slane %v284, %v290
    %vm292 = vcmp.ne.s32.totalorder %v291, 0
    %vm293 = vmand %vm272, %vm292
    %v294 = vld [vmem:[#allocation2] sm:$0x3]
    %v295 = vsub.f32 %v227, %v254
    %v296 = vsub.f32 %v228, %v261
    %v299 = vcombine.low %v295, %v296
    %v301 = vunpack.c.l.s4 1966171168
    %v302 = vunpack.c.0.s8 %v301
    %v303 = vlaneseq
    %v304 = vshrl.u32 %v303, 7
    %v305 = vsub.s32 %v302, %v304
    %v306 = vrot.slane %v299, %v305
    %v308 = vunpack.c.l.s4 1966171168
    %v309 = vunpack.c.0.s8 %v308
    %v310 = vlaneseq
    %v311 = vshrl.u32 %v310, 7
    %v312 = vsub.s32 %v309, %v311
    %v313 = vrot.slane %v306, %v312
    %v315 = vsel %vm293, %v313, 0.0
    %v316 = vadd.f32 %v294, %v315
    %v317 = vlaneseq
    %vm318 = vcmp.ge.s32.totalorder %v317, 0
    %vm319 = vcmp.lt.s32.totalorder %v317, 256
    %vm320 = vmand %vm318, %vm319
    %321 = vst.msk [vmem:[#allocation2] sm:$0x3] %vm320, %v316
    %v322 = vld [vmem:[#allocation3] sm:$0x3]
    %v323 = vsel %vm293, 1, 0
    %v324 = vcvt.s32.f32 %v323
    %v325 = vadd.f32 %v322, %v324
    %326 = vst.msk [vmem:[#allocation3] sm:$0x3] %vm320, %v325
    // Predicated region
    $region18: #{tpu_custom_call.1} parent=1 // pred_check
      %p327 = pneg %p76
    $region19: #{tpu_custom_call.1} parent=1 // pred_check_branch
      %329 = sbr.rel (%p327) target = $region21
    $region20: #{tpu_custom_call.1} parent=1 // pred_region
      %v330 = vld [vmem:[#allocation2] sm:$0x3]
      %v332 = vlaneseq
      %v333 = vshrl.u32 %v332, 7
      %v334 = vsub.s32 0, %v333
      %v335 = vrot.slane %v330, %v334
      %v336 = vlaneseq
      %v337 = vshrl.u32 %v336, 7
      %v338 = vsub.s32 1, %v337
      %v339 = vrot.slane %v330, %v338
      %vm342 = vcmask 1040384
      %v343 = vsel %vm342, %v335, 0.0
      %v344 = vsel %vm342, %v339, 0.0
      %v345 = vadd.f32 %v343, %v344
      %346 = vadd.xlane.f32.xlu0 %v345
      %v347 = vpop.xlane.xlu0 %346
      %v348 = vrot.slane %v347, 4
      %v349 = vadd.f32 %v347, %v348
      %v350 = vrot.slane %v349, 2
      %v351 = vadd.f32 %v349, %v350
      %v352 = vrot.slane %v351, 1
      %v353 = vadd.f32 %v351, %v352
      %s354 = vtos %v353
      %v355 = vld [vmem:[#allocation3] sm:$0x3]
      %v357 = vlaneseq
      %v358 = vshrl.u32 %v357, 7
      %v359 = vsub.s32 0, %v358
      %v360 = vrot.slane %v355, %v359
      %v361 = vlaneseq
      %v362 = vshrl.u32 %v361, 7
      %v363 = vsub.s32 1, %v362
      %v364 = vrot.slane %v355, %v363
      %v367 = vsel %vm342, %v360, 0.0
      %v368 = vsel %vm342, %v364, 0.0
      %v369 = vadd.f32 %v367, %v368
      %370 = vadd.xlane.f32.xlu0 %v369
      %v371 = vpop.xlane.xlu0 %370
      %v372 = vrot.slane %v371, 4
      %v373 = vadd.f32 %v371, %v372
      %v374 = vrot.slane %v373, 2
      %v375 = vadd.f32 %v373, %v374
      %v376 = vrot.slane %v375, 1
      %v377 = vadd.f32 %v375, %v376
      %s378 = vtos %v377
      %v379 = vld [vmem:[%s2] sm:$0xff]
      %v380 = vld [vmem:[%s2 + $0x8] sm:$0xff]
      %v381 = vld [vmem:[%s2 + $0x10] sm:$0xff]
      %v382 = vld [vmem:[%s2 + $0x18] sm:$0xff]
      %v383 = vld [vmem:[%s2 + $0x20] sm:$0xff]
      %v384 = vld [vmem:[%s2 + $0x28] sm:$0xff]
      %v385 = vld [vmem:[%s2 + $0x30] sm:$0xff]
      %v386 = vld [vmem:[%s2 + $0x38] sm:$0xff]
      %v387 = vld [vmem:[%s2 + $0x40] sm:$0xff]
      %v388 = vld [vmem:[%s2 + $0x48] sm:$0xff]
      %v389 = vld [vmem:[%s2 + $0x50] sm:$0xff]
      %v390 = vld [vmem:[%s2 + $0x58] sm:$0xff]
      %v391 = vld [vmem:[%s2 + $0x60] sm:$0xff]
      %v392 = vld [vmem:[%s2 + $0x68] sm:$0xff]
      %v393 = vld [vmem:[%s2 + $0x70] sm:$0xff]
      %v394 = vld [vmem:[%s2 + $0x78] sm:$0xff]
      %vm395 = vcmask 523264
      %v397 = vsel %vm395, %v379, 0
      %v400 = vsel %vm395, %v380, 0
      %v403 = vsel %vm395, %v381, 0
      %v406 = vsel %vm395, %v382, 0
      %v409 = vsel %vm395, %v383, 0
      %v412 = vsel %vm395, %v384, 0
      %v415 = vsel %vm395, %v385, 0
      %v418 = vsel %vm395, %v386, 0
      %420 = vmatprep.subr.mxu0 0.0
      %421 = vmatpush1.xpose.msra.mxu0 0.0
      %422 = vmatprep.subr.mxu0 0.0
      %423 = vmatpush1.xpose.msra.mxu0 0.0
      %424 = vmatprep.subr.mxu0 0.0
      %425 = vmatpush1.xpose.msra.mxu0 0.0
      %426 = vmatprep.subr.mxu0 0.0
      %427 = vmatpush1.xpose.msra.mxu0 0.0
      %428 = vmatprep.subr.mxu0 0.0
      %429 = vmatpush1.xpose.msra.mxu0 0.0
      %430 = vmatprep.subr.mxu0 0.0
      %431 = vmatpush1.xpose.msra.mxu0 0.0
      %432 = vmatprep.subr.mxu0 0.0
      %433 = vmatpush1.xpose.msra.mxu0 0.0
      %434 = vmatprep.subr.mxu0 0.0
      %435 = vmatpush1.xpose.msra.mxu0 0.0
      %436 = vmatprep.subr.mxu0 0.0
      %437 = vmatpush1.xpose.msra.mxu0 %v418
      %438 = vmatprep.subr.mxu0 0.0
      %439 = vmatpush1.xpose.msra.mxu0 %v415
      %440 = vmatprep.subr.mxu0 0.0
      %441 = vmatpush1.xpose.msra.mxu0 %v412
      %442 = vmatprep.subr.mxu0 0.0
      %443 = vmatpush1.xpose.msra.mxu0 %v409
      %444 = vmatprep.subr.mxu0 0.0
      %445 = vmatpush1.xpose.msra.mxu0 %v406
      %446 = vmatprep.subr.mxu0 0.0
      %447 = vmatpush1.xpose.msra.mxu0 %v403
      %448 = vmatprep.subr.mxu0 0.0
      %449 = vmatpush1.xpose.msra.mxu0 %v400
      %450 = vmatprep.subr.mxu0 0.0
      %451 = vmatpush1.xpose.msra.mxu0 %v397
      %452 = vmatprep.subr.mxu0 0.0
      %453 = vmatpush2.xpose.msra.mxu0 0.0
      %454 = vmatprep.subr.mxu0 0.0
      %455 = vmatpush2.xpose.msra.mxu0 0.0
      %456 = vmatprep.subr.mxu0 0.0
      %457 = vmatpush2.xpose.msra.mxu0 0.0
      %458 = vmatprep.subr.mxu0 0.0
      %459 = vmatpush2.xpose.msra.mxu0 0.0
      %460 = vmatprep.subr.mxu0 0.0
      %461 = vmatpush2.xpose.msra.mxu0 0.0
      %462 = vmatprep.subr.mxu0 0.0
      %463 = vmatpush2.xpose.msra.mxu0 0.0
      %464 = vmatprep.subr.mxu0 0.0
      %465 = vmatpush2.xpose.msra.mxu0 0.0
      %466 = vmatprep.subr.mxu0 0.0
      %467 = vmatpush2.xpose.msra.mxu0 0.0
      %468 = vmatprep.subr.mxu0 0.0
      %469 = vmatpush2.xpose.msra.mxu0 0.0
      %470 = vmatprep.subr.mxu0 0.0
      %471 = vmatpush2.xpose.msra.mxu0 0.0
      %472 = vmatprep.subr.mxu0 0.0
      %473 = vmatpush2.xpose.msra.mxu0 0.0
      %474 = vmatprep.subr.mxu0 0.0
      %475 = vmatpush2.xpose.msra.mxu0 0.0
      %476 = vmatprep.subr.mxu0 0.0
      %477 = vmatpush2.xpose.msra.mxu0 0.0
      %478 = vmatprep.subr.mxu0 0.0
      %479 = vmatpush2.xpose.msra.mxu0 0.0
      %480 = vmatprep.subr.mxu0 0.0
      %481 = vmatpush2.xpose.msra.mxu0 0.0
      %482 = vmatprep.subr.mxu0 0.0
      %483 = vmatpush2.xpose.msra.mxu0 0.0
      %484 = vmatprep.mubr.f32.mxu0 0.0
      %485 = vmatmul.mubr.f32.gmra.mxu0 %v397
      %v486 = vpop.f32.mrf.mxu0
      %v487 = vadd.f32 0.0, %v486
      %v488 = vpop.f32.mrf.mxu0
      %489 = vmatprep.mubr.f32.mxu0 0.0
      %490 = vmatmul.mubr.f32.gmra.mxu0 %v400
      %v491 = vpop.f32.mrf.mxu0
      %v492 = vadd.f32 0.0, %v491
      %v493 = vpop.f32.mrf.mxu0
      %494 = vmatprep.mubr.f32.mxu0 0.0
      %495 = vmatmul.mubr.f32.gmra.mxu0 %v403
      %v496 = vpop.f32.mrf.mxu0
      %v497 = vadd.f32 0.0, %v496
      %v498 = vpop.f32.mrf.mxu0
      %499 = vmatprep.mubr.f32.mxu0 0.0
      %500 = vmatmul.mubr.f32.gmra.mxu0 %v406
      %v501 = vpop.f32.mrf.mxu0
      %v502 = vadd.f32 0.0, %v501
      %v503 = vpop.f32.mrf.mxu0
      %504 = vmatprep.mubr.f32.mxu0 0.0
      %505 = vmatmul.mubr.f32.gmra.mxu0 %v409
      %v506 = vpop.f32.mrf.mxu0
      %v507 = vadd.f32 0.0, %v506
      %v508 = vpop.f32.mrf.mxu0
      %509 = vmatprep.mubr.f32.mxu0 0.0
      %510 = vmatmul.mubr.f32.gmra.mxu0 %v412
      %v511 = vpop.f32.mrf.mxu0
      %v512 = vadd.f32 0.0, %v511
      %v513 = vpop.f32.mrf.mxu0
      %514 = vmatprep.mubr.f32.mxu0 0.0
      %515 = vmatmul.mubr.f32.gmra.mxu0 %v415
      %v516 = vpop.f32.mrf.mxu0
      %v517 = vadd.f32 0.0, %v516
      %v518 = vpop.f32.mrf.mxu0
      %519 = vmatprep.mubr.f32.mxu0 0.0
      %520 = vmatmul.mubr.f32.gmra.mxu0 %v418
      %v521 = vpop.f32.mrf.mxu0
      %v522 = vadd.f32 0.0, %v521
      %v523 = vpop.f32.mrf.mxu0
      %524 = vdwg.mxu0
      %v526 = vsel %vm395, %v387, 0
      %v529 = vsel %vm395, %v388, 0
      %v532 = vsel %vm395, %v389, 0
      %v535 = vsel %vm395, %v390, 0
      %v538 = vsel %vm395, %v391, 0
      %v541 = vsel %vm395, %v392, 0
      %v544 = vsel %vm395, %v393, 0
      %v547 = vsel %vm395, %v394, 0
      %549 = vmatprep.subr.mxu0 0.0
      %550 = vmatpush1.xpose.msra.mxu0 0.0
      %551 = vmatprep.subr.mxu0 0.0
      %552 = vmatpush1.xpose.msra.mxu0 0.0
      %553 = vmatprep.subr.mxu0 0.0
      %554 = vmatpush1.xpose.msra.mxu0 0.0
      %555 = vmatprep.subr.mxu0 0.0
      %556 = vmatpush1.xpose.msra.mxu0 0.0
      %557 = vmatprep.subr.mxu0 0.0
      %558 = vmatpush1.xpose.msra.mxu0 0.0
      %559 = vmatprep.subr.mxu0 0.0
      %560 = vmatpush1.xpose.msra.mxu0 0.0
      %561 = vmatprep.subr.mxu0 0.0
      %562 = vmatpush1.xpose.msra.mxu0 0.0
      %563 = vmatprep.subr.mxu0 0.0
      %564 = vmatpush1.xpose.msra.mxu0 0.0
      %565 = vmatprep.subr.mxu0 0.0
      %566 = vmatpush1.xpose.msra.mxu0 %v547
      %567 = vmatprep.subr.mxu0 0.0
      %568 = vmatpush1.xpose.msra.mxu0 %v544
      %569 = vmatprep.subr.mxu0 0.0
      %570 = vmatpush1.xpose.msra.mxu0 %v541
      %571 = vmatprep.subr.mxu0 0.0
      %572 = vmatpush1.xpose.msra.mxu0 %v538
      %573 = vmatprep.subr.mxu0 0.0
      %574 = vmatpush1.xpose.msra.mxu0 %v535
      %575 = vmatprep.subr.mxu0 0.0
      %576 = vmatpush1.xpose.msra.mxu0 %v532
      %577 = vmatprep.subr.mxu0 0.0
      %578 = vmatpush1.xpose.msra.mxu0 %v529
      %579 = vmatprep.subr.mxu0 0.0
      %580 = vmatpush1.xpose.msra.mxu0 %v526
      %581 = vmatprep.subr.mxu0 0.0
      %582 = vmatpush2.xpose.msra.mxu0 0.0
      %583 = vmatprep.subr.mxu0 0.0
      %584 = vmatpush2.xpose.msra.mxu0 0.0
      %585 = vmatprep.subr.mxu0 0.0
      %586 = vmatpush2.xpose.msra.mxu0 0.0
      %587 = vmatprep.subr.mxu0 0.0
      %588 = vmatpush2.xpose.msra.mxu0 0.0
      %589 = vmatprep.subr.mxu0 0.0
      %590 = vmatpush2.xpose.msra.mxu0 0.0
      %591 = vmatprep.subr.mxu0 0.0
      %592 = vmatpush2.xpose.msra.mxu0 0.0
      %593 = vmatprep.subr.mxu0 0.0
      %594 = vmatpush2.xpose.msra.mxu0 0.0
      %595 = vmatprep.subr.mxu0 0.0
      %596 = vmatpush2.xpose.msra.mxu0 0.0
      %597 = vmatprep.subr.mxu0 0.0
      %598 = vmatpush2.xpose.msra.mxu0 0.0
      %599 = vmatprep.subr.mxu0 0.0
      %600 = vmatpush2.xpose.msra.mxu0 0.0
      %601 = vmatprep.subr.mxu0 0.0
      %602 = vmatpush2.xpose.msra.mxu0 0.0
      %603 = vmatprep.subr.mxu0 0.0
      %604 = vmatpush2.xpose.msra.mxu0 0.0
      %605 = vmatprep.subr.mxu0 0.0
      %606 = vmatpush2.xpose.msra.mxu0 0.0
      %607 = vmatprep.subr.mxu0 0.0
      %608 = vmatpush2.xpose.msra.mxu0 0.0
      %609 = vmatprep.subr.mxu0 0.0
      %610 = vmatpush2.xpose.msra.mxu0 0.0
      %611 = vmatprep.subr.mxu0 0.0
      %612 = vmatpush2.xpose.msra.mxu0 0.0
      %613 = vmatprep.mubr.f32.mxu0 0.0
      %614 = vmatmul.mubr.f32.gmra.mxu0 %v526
      %v615 = vpop.f32.mrf.mxu0
      %v616 = vadd.f32 0.0, %v615
      %v617 = vpop.f32.mrf.mxu0
      %618 = vmatprep.mubr.f32.mxu0 0.0
      %619 = vmatmul.mubr.f32.gmra.mxu0 %v529
      %v620 = vpop.f32.mrf.mxu0
      %v621 = vadd.f32 0.0, %v620
      %v622 = vpop.f32.mrf.mxu0
      %623 = vmatprep.mubr.f32.mxu0 0.0
      %624 = vmatmul.mubr.f32.gmra.mxu0 %v532
      %v625 = vpop.f32.mrf.mxu0
      %v626 = vadd.f32 0.0, %v625
      %v627 = vpop.f32.mrf.mxu0
      %628 = vmatprep.mubr.f32.mxu0 0.0
      %629 = vmatmul.mubr.f32.gmra.mxu0 %v535
      %v630 = vpop.f32.mrf.mxu0
      %v631 = vadd.f32 0.0, %v630
      %v632 = vpop.f32.mrf.mxu0
      %633 = vmatprep.mubr.f32.mxu0 0.0
      %634 = vmatmul.mubr.f32.gmra.mxu0 %v538
      %v635 = vpop.f32.mrf.mxu0
      %v636 = vadd.f32 0.0, %v635
      %v637 = vpop.f32.mrf.mxu0
      %638 = vmatprep.mubr.f32.mxu0 0.0
      %639 = vmatmul.mubr.f32.gmra.mxu0 %v541
      %v640 = vpop.f32.mrf.mxu0
      %v641 = vadd.f32 0.0, %v640
      %v642 = vpop.f32.mrf.mxu0
      %643 = vmatprep.mubr.f32.mxu0 0.0
      %644 = vmatmul.mubr.f32.gmra.mxu0 %v544
      %v645 = vpop.f32.mrf.mxu0
      %v646 = vadd.f32 0.0, %v645
      %v647 = vpop.f32.mrf.mxu0
      %648 = vmatprep.mubr.f32.mxu0 0.0
      %649 = vmatmul.mubr.f32.gmra.mxu0 %v547
      %v650 = vpop.f32.mrf.mxu0
      %v651 = vadd.f32 0.0, %v650
      %v652 = vpop.f32.mrf.mxu0
      %653 = vdwg.mxu0
      %v654 = vadd.s32 %v230, 16
      %v655 = vadd.s32 %v230, 24
      %v656 = vadd.s32 %v230, 32
      %v657 = vadd.s32 %v230, 40
      %v658 = vadd.s32 %v230, 48
      %v659 = vadd.s32 %v230, 56
      %vm660 = vcmp.eq.s32.totalorder %v230, %v263
      %vm661 = vcmp.eq.s32.totalorder %v231, %v263
      %vm662 = vcmp.eq.s32.totalorder %v654, %v263
      %vm663 = vcmp.eq.s32.totalorder %v655, %v263
      %vm664 = vcmp.eq.s32.totalorder %v656, %v263
      %vm665 = vcmp.eq.s32.totalorder %v657, %v263
      %vm666 = vcmp.eq.s32.totalorder %v658, %v263
      %vm667 = vcmp.eq.s32.totalorder %v659, %v263
      %v668 = vsel %vm660, 1.0, 0.0
      %v669 = vsel %vm661, 1.0, 0.0
      %v670 = vsel %vm662, 1.0, 0.0
      %v671 = vsel %vm663, 1.0, 0.0
      %v672 = vsel %vm664, 1.0, 0.0
      %v673 = vsel %vm665, 1.0, 0.0
      %v674 = vsel %vm666, 1.0, 0.0
      %v675 = vsel %vm667, 1.0, 0.0
      %v676 = vsub.f32 %v487, %v668
      %v677 = vsub.f32 %v492, %v669
      %v678 = vsub.f32 %v497, %v670
      %v679 = vsub.f32 %v502, %v671
      %v680 = vsub.f32 %v507, %v672
      %v681 = vsub.f32 %v512, %v673
      %v682 = vsub.f32 %v517, %v674
      %v683 = vsub.f32 %v522, %v675
      %v684 = vsub.f32 %v616, %v668
      %v685 = vsub.f32 %v621, %v669
      %v686 = vsub.f32 %v626, %v670
      %v687 = vsub.f32 %v631, %v671
      %v688 = vsub.f32 %v636, %v672
      %v689 = vsub.f32 %v641, %v673
      %v690 = vsub.f32 %v646, %v674
      %v691 = vsub.f32 %v651, %v675
      %v692 = vmul.f32 %v676, %v676
      %v693 = vmul.f32 %v677, %v677
      %v694 = vmul.f32 %v678, %v678
      %v695 = vmul.f32 %v679, %v679
      %v696 = vmul.f32 %v680, %v680
      %v697 = vmul.f32 %v681, %v681
      %v698 = vmul.f32 %v682, %v682
      %v699 = vmul.f32 %v683, %v683
      %v700 = vmul.f32 %v684, %v684
      %v701 = vmul.f32 %v685, %v685
      %v702 = vmul.f32 %v686, %v686
      %v703 = vmul.f32 %v687, %v687
      %v704 = vmul.f32 %v688, %v688
      %v705 = vmul.f32 %v689, %v689
      %v706 = vmul.f32 %v690, %v690
      %v707 = vmul.f32 %v691, %v691
      %v708 = vsel %vm395, %v692, 0.0
      %709 = vadd.xlane.f32.xlu0 %v708
      %v710 = vpop.xlane.xlu0 %709
      %v711 = vsel %vm395, %v693, 0.0
      %712 = vadd.xlane.f32.xlu0 %v711
      %v713 = vpop.xlane.xlu0 %712
      %v714 = vsel %vm395, %v694, 0.0
      %715 = vadd.xlane.f32.xlu0 %v714
      %v716 = vpop.xlane.xlu0 %715
      %v717 = vsel %vm395, %v695, 0.0
      %718 = vadd.xlane.f32.xlu0 %v717
      %v719 = vpop.xlane.xlu0 %718
      %v720 = vsel %vm395, %v696, 0.0
      %721 = vadd.xlane.f32.xlu0 %v720
      %v722 = vpop.xlane.xlu0 %721
      %v723 = vsel %vm395, %v697, 0.0
      %724 = vadd.xlane.f32.xlu0 %v723
      %v725 = vpop.xlane.xlu0 %724
      %v726 = vsel %vm395, %v698, 0.0
      %727 = vadd.xlane.f32.xlu0 %v726
      %v728 = vpop.xlane.xlu0 %727
      %v729 = vsel %vm395, %v699, 0.0
      %730 = vadd.xlane.f32.xlu0 %v729
      %v731 = vpop.xlane.xlu0 %730
      %v732 = vsel %vm395, %v700, 0.0
      %733 = vadd.xlane.f32.xlu0 %v732
      %v734 = vpop.xlane.xlu0 %733
      %v735 = vsel %vm395, %v701, 0.0
      %736 = vadd.xlane.f32.xlu0 %v735
      %v737 = vpop.xlane.xlu0 %736
      %v738 = vsel %vm395, %v702, 0.0
      %739 = vadd.xlane.f32.xlu0 %v738
      %v740 = vpop.xlane.xlu0 %739
      %v741 = vsel %vm395, %v703, 0.0
      %742 = vadd.xlane.f32.xlu0 %v741
      %v743 = vpop.xlane.xlu0 %742
      %v744 = vsel %vm395, %v704, 0.0
      %745 = vadd.xlane.f32.xlu0 %v744
      %v746 = vpop.xlane.xlu0 %745
      %v747 = vsel %vm395, %v705, 0.0
      %748 = vadd.xlane.f32.xlu0 %v747
      %v749 = vpop.xlane.xlu0 %748
      %v750 = vsel %vm395, %v706, 0.0
      %751 = vadd.xlane.f32.xlu0 %v750
      %v752 = vpop.xlane.xlu0 %751
      %v753 = vsel %vm395, %v707, 0.0
      %754 = vadd.xlane.f32.xlu0 %v753
      %v755 = vpop.xlane.xlu0 %754
      %v772 = vlaneseq
      %v773 = vshrl.u32 %v772, 7
      %v774 = vsub.s32 %v263, %v773
      %v775 = vrot.slane %v710, %v774
      %v776 = vadd.s32 %v263, 4294967288
      %v777 = vlaneseq
      %v778 = vshrl.u32 %v777, 7
      %v779 = vsub.s32 %v776, %v778
      %v780 = vrot.slane %v713, %v779
      %vm781 = vcmask 130112
      %v782 = vsel %vm781, %v780, %v775
      %v783 = vadd.s32 %v263, 4294967280
      %v784 = vlaneseq
      %v785 = vshrl.u32 %v784, 7
      %v786 = vsub.s32 %v783, %v785
      %v787 = vrot.slane %v716, %v786
      %vm788 = vcmask 195712
      %v789 = vsel %vm788, %v787, %v782
      %v790 = vadd.s32 %v263, 4294967272
      %v791 = vlaneseq
      %v792 = vshrl.u32 %v791, 7
      %v793 = vsub.s32 %v790, %v792
      %v794 = vrot.slane %v719, %v793
      %vm795 = vcmask 261312
      %v796 = vsel %vm795, %v794, %v789
      %v797 = vadd.s32 %v263, 4294967264
      %v798 = vlaneseq
      %v799 = vshrl.u32 %v798, 7
      %v800 = vsub.s32 %v797, %v799
      %v801 = vrot.slane %v722, %v800
      %vm802 = vcmask 326912
      %v803 = vsel %vm802, %v801, %v796
      %v804 = vadd.s32 %v263, 4294967256
      %v805 = vlaneseq
      %v806 = vshrl.u32 %v805, 7
      %v807 = vsub.s32 %v804, %v806
      %v808 = vrot.slane %v725, %v807
      %vm809 = vcmask 392512
      %v810 = vsel %vm809, %v808, %v803
      %v811 = vadd.s32 %v263, 4294967248
      %v812 = vlaneseq
      %v813 = vshrl.u32 %v812, 7
      %v814 = vsub.s32 %v811, %v813
      %v815 = vrot.slane %v728, %v814
      %vm816 = vcmask 458112
      %v817 = vsel %vm816, %v815, %v810
      %v818 = vadd.s32 %v263, 4294967240
      %v819 = vlaneseq
      %v820 = vshrl.u32 %v819, 7
      %v821 = vsub.s32 %v818, %v820
      %v822 = vrot.slane %v731, %v821
      %vm823 = vcmask 523712
      %v824 = vsel %vm823, %v822, %v817
      %v825 = vlaneseq
      %v826 = vshrl.u32 %v825, 7
      %v827 = vsub.s32 %v263, %v826
      %v828 = vrot.slane %v734, %v827
      %v829 = vlaneseq
      %v830 = vshrl.u32 %v829, 7
      %v831 = vsub.s32 %v776, %v830
      %v832 = vrot.slane %v737, %v831
      %v833 = vsel %vm781, %v832, %v828
      %v834 = vlaneseq
      %v835 = vshrl.u32 %v834, 7
      %v836 = vsub.s32 %v783, %v835
      %v837 = vrot.slane %v740, %v836
      %v838 = vsel %vm788, %v837, %v833
      %v839 = vlaneseq
      %v840 = vshrl.u32 %v839, 7
      %v841 = vsub.s32 %v790, %v840
      %v842 = vrot.slane %v743, %v841
      %v843 = vsel %vm795, %v842, %v838
      %v844 = vlaneseq
      %v845 = vshrl.u32 %v844, 7
      %v846 = vsub.s32 %v797, %v845
      %v847 = vrot.slane %v746, %v846
      %v848 = vsel %vm802, %v847, %v843
      %v849 = vlaneseq
      %v850 = vshrl.u32 %v849, 7
      %v851 = vsub.s32 %v804, %v850
      %v852 = vrot.slane %v749, %v851
      %v853 = vsel %vm809, %v852, %v848
      %v854 = vlaneseq
      %v855 = vshrl.u32 %v854, 7
      %v856 = vsub.s32 %v811, %v855
      %v857 = vrot.slane %v752, %v856
      %v858 = vsel %vm816, %v857, %v853
      %v859 = vlaneseq
      %v860 = vshrl.u32 %v859, 7
      %v861 = vsub.s32 %v818, %v860
      %v862 = vrot.slane %v755, %v861
      %v863 = vsel %vm823, %v862, %v858
      %vm864 = vcmask 1041409
      %v865 = vsel %vm864, %v863, %v824
      %vm867 = vcmask 517120
      %v868 = vsel %vm867, %v865, 0.0
      %869 = vadd.xlane.f32.xlu0 %v868
      %v870 = vpop.xlane.xlu0 %869
      %v871 = vrsqrt.pop %v870
      %v872 = vmul.f32 %v870, %v871
      %vm873 = vcmp.eq.f32.partialorder %v870, inf
      %v874 = vsel %vm873, %v870, %v872
      %vm875 = vcmp.eq.f32.partialorder %v870, 0.0
      %v876 = vand.u32 %v870, 2147483648
      %v877 = vsel %vm875, %v876, %v874
      %vm878 = vcmask 1024
      %v879 = vsel %vm878, %v877, 0.0
      %880 = vadd.xlane.f32.xlu0 %v879
      %v881 = vpop.xlane.xlu0 %880
      %v882 = vrot.slane %v881, 4
      %v883 = vadd.f32 %v881, %v882
      %v884 = vrot.slane %v883, 2
      %v885 = vadd.f32 %v883, %v884
      %v886 = vrot.slane %v885, 1
      %v887 = vadd.f32 %v885, %v886
      %s888 = vtos %v887
      %v889 = vrcp.pop 2.0
      %s890 = vtos %v889
      %s891 = smul.f32 %s888, %s890
      %vm892 = vcmp.eq.s32.totalorder %v263, 0
      %vm893 = vcmp.eq.s32.totalorder %v263, 1
      %vm894 = vcmp.eq.s32.totalorder %v263, 2
      %v895 = vstv %s891
      %v896 = vsel %vm894, %v895, 0.0
      %v897 = vstv %s378
      %v898 = vsel %vm893, %v897, %v896
      %v899 = vstv %s354
      %v900 = vsel %vm892, %v899, %v898
      %901 = vst [vmem:[#allocation4] sm:$0x1] %v900
    $region21: #{tpu_custom_call.1} parent=1 // pred_fallthru
      _
    // Predicated region
    $region22: #{tpu_custom_call.1} parent=1 // pred_check
      _
    $region23: #{tpu_custom_call.1} parent=1 // pred_check_branch
      %903 = sbr.rel (0) target = $region25
    $region24: #{tpu_custom_call.1} parent=1 // pred_region
      %s905 = ssub.s32 16, 16
      %906 = vsyncadd [#allocation5], %s905
      %s908 = sshll.u32 [#allocation4], 4
      %s909 = int_to_ptr.vmem [resolvable:$true] %s908
      %911 = dma.vmem_to_hbm [thread:$0]  %s909, 16, %s3, [#allocation5]
    $region25: #{tpu_custom_call.1} parent=1 // pred_fallthru
      _
    // Predicated region
    $region26: #{tpu_custom_call.1} parent=1 // pred_check
      _
    $region27: #{tpu_custom_call.1} parent=1 // pred_check_branch
      %913 = sbr.rel (0) target = $region29
    $region28: #{tpu_custom_call.1} parent=1 // pred_region
      %914 = dma.done [#allocation5], 16
    $region29: #{tpu_custom_call.1} parent=1 // pred_fallthru
      _
    %915 = vsyncpa [#allocation5], 1

</llo_original>
